<compile_context>
chip_gen: v7x
topology: tpu7x:2x2x1
jax: 0.10.0
libtpu: 0.0.40
codegen_flags: <defaults>
</compile_context>

<pallas_src>
import jax
import jax.numpy as jnp
import numpy as np
from jax.experimental import pallas as pl
from jax.experimental.pallas import tpu as pltpu

EPS = 1e-7


def _round_up(n, m):
    return ((n + m - 1) // m) * m


def _pick_src_tile(ns_p, cap):
    """Largest multiple-of-256 divisor of ns_p that is <= cap (>= 256)."""
    t = min(cap, ns_p)
    t -= t % 256
    while t > 256 and ns_p % t != 0:
        t -= 256
    return max(t, 256)


def genconv_kernel(adj_ref, ep_ref, w_ref, b_ref, out_ref, acc_ref):
    k = pl.program_id(1)

    @pl.when(k == 0)
    def _():
        acc_ref[...] = jnp.zeros_like(acc_ref)

    # int8 0/1 adjacency tile -> bf16 MXU operand.  Two-step widen via f32 keeps
    # the lowering simple; the VPU work is hidden under the MXU matmul.
    adj = adj_ref[...].astype(jnp.float32).astype(jnp.bfloat16)

    # One fused matmul: [tile_dst, tile_src] @ [tile_src, 2*fin_p].
    # Columns [:fin_p] accumulate the softmax denominator, [fin_p:] the
    # exp-weighted messages.  f32 accumulation in VMEM scratch.
    acc_ref[...] += jnp.dot(adj, ep_ref[...], preferred_element_type=jnp.float32)

    @pl.when(k == pl.num_programs(1) - 1)
    def _():
        fin_p = acc_ref.shape[1] // 2
        acc = acc_ref[...]
        denom = acc[:, :fin_p]            # lane-aligned slice (free)
        numer = acc[:, fin_p:]
        # denom == 0 only for isolated/padded destinations, where numer is
        # exactly 0 as well -> h = 0, matching torch.zeros_like(x).scatter_add_.
        # Approx reciprocal runs on the otherwise-idle EUP slot.
        inv = pl.reciprocal(jnp.maximum(denom, 1e-30), approx=True)
        h = numer * inv                   # [tile_dst, fin_p]
        # final mlp = nn.Linear(in_feat, out_feat)
        out_ref[...] = (
            jnp.dot(h.astype(jnp.bfloat16), w_ref[...],
                    preferred_element_type=jnp.float32)
            + b_ref[...]
        )


def pad_adjacency(adj, *, tile_dst=256):
    """Per-graph preprocessing (hoisted out of the per-call hot path):
    pad the dense [N_dst, N_src] 0/1 mask and store it as int8 in HBM."""
    n_dst, n_src = adj.shape
    nd_p = _round_up(n_dst, tile_dst)
    ns_p = _round_up(max(n_src, 256), 256)
    return (jnp.zeros((nd_p, ns_p), jnp.int8)
            .at[:n_dst, :n_src].set(adj.astype(jnp.int8)))


def genconv_forward(x, adj_p, w, b, beta, *, tile_dst=256, max_tile_src=2048):
    """GENConv(aggr='softmax_sg', use_msg_norm=False) forward.

    x     : [N, Fin]      f32 node features
    adj_p : [nd_p, ns_p]  int8 padded 0/1 mask from pad_adjacency()
                          (adj[dst, src] = 1 iff edge (dst, src))
    w     : [Fin, Fout]   nn.Linear weight, pre-transposed (out = h @ w + b)
    b     : [1, Fout]     bias
    beta  : [1, 1]        softmax_sg temperature
    """
    N, Fin = x.shape
    Fout = w.shape[1]
    nd_p, ns_p = adj_p.shape
    fin_p = _round_up(Fin, 128)
    fout_p = _round_up(Fout, 128)
    tile_src = _pick_src_tile(ns_p, max_tile_src)
    assert nd_p % tile_dst == 0 and ns_p % tile_src == 0

    # ---- hoisted message encoder: once per call, NOT once per dst tile ------
    beta_s = jnp.asarray(beta, jnp.float32).reshape(())
    x_p = jnp.zeros((ns_p, fin_p), jnp.float32).at[:N, :Fin].set(x)
    msg = jnp.maximum(x_p, 0.0) + EPS                 # relu(x[src]) + eps
    logits = beta_s * msg
    m_g = jnp.max(logits, axis=0, keepdims=True)      # global per-channel shift
    e = jnp.exp(logits - m_g)
    ep = jnp.concatenate([e, e * msg], axis=1).astype(jnp.bfloat16)  # [ns_p, 2*fin_p]

    # (w/b padding is cheap; cache per parameter set if called in a tight loop)
    w_p = jnp.zeros((fin_p, fout_p), jnp.bfloat16).at[:Fin, :Fout].set(
        w.astype(jnp.bfloat16))
    b_p = jnp.zeros((1, fout_p), jnp.float32).at[:, :Fout].set(
        jnp.asarray(b, jnp.float32).reshape(1, Fout))

    grid = (nd_p // tile_dst, ns_p // tile_src)
    n_dst_tiles = grid[0]

    # ---- explicit VMEM budget (never below 32 MiB default, capped at 64 MiB) -
    vmem_need = (
        2 * tile_dst * tile_src * 1            # adj int8 tile, double-buffered
        + 2 * tile_src * (2 * fin_p) * 2       # ep bf16 tile, double-buffered
        + 2 * fin_p * fout_p * 2               # W (bf16, resident)
        + 2 * 8 * fout_p * 4                   # bias (sublane-padded)
        + 2 * tile_dst * fout_p * 4            # output tile, double-buffered
        + tile_dst * 2 * fin_p * 4             # f32 accumulator scratch
        + tile_dst * tile_src * 6              # in-kernel adj widen temporaries
        + tile_dst * fin_p * 10                # inv / h / h_bf16 temporaries
    )
    vmem_limit = max(32 * 1024 * 1024, min(2 * vmem_need, 64 * 1024 * 1024))

    cost = pl.CostEstimate(
        flops=2 * nd_p * ns_p * (2 * fin_p) + 2 * nd_p * fin_p * fout_p,
        transcendentals=nd_p * fin_p,          # approx reciprocal (exp is hoisted)
        bytes_accessed=(adj_p.size * 1
                        + ep.size * 2 * n_dst_tiles
                        + w_p.size * 2 + b_p.size * 4
                        + nd_p * fout_p * 4),
    )

    out_p = pl.pallas_call(
        genconv_kernel,
        out_shape=jax.ShapeDtypeStruct((nd_p, fout_p), jnp.float32),
        grid=grid,
        in_specs=[
            pl.BlockSpec((tile_dst, tile_src), lambda i, k: (i, k)),   # adj (int8)
            pl.BlockSpec((tile_src, 2 * fin_p), lambda i, k: (k, 0)),  # [E | E*msg]
            pl.BlockSpec((fin_p, fout_p), lambda i, k: (0, 0)),        # W (resident)
            pl.BlockSpec((1, fout_p), lambda i, k: (0, 0)),            # b (resident)
        ],
        out_specs=pl.BlockSpec((tile_dst, fout_p), lambda i, k: (i, 0)),
        scratch_shapes=[pltpu.VMEM((tile_dst, 2 * fin_p), jnp.float32)],
        compiler_params=pltpu.CompilerParams(
            dimension_semantics=("parallel", "arbitrary"),  # dst || across TCs, K reduce
            vmem_limit_bytes=vmem_limit),
        cost_estimate=cost,
    )(adj_p, ep, w_p, b_p)

    return out_p[:N, :Fout]


if __name__ == "__main__":
    key = jax.random.PRNGKey(0)
    N, Fin, Fout = 256, 96, 64
    k1, k2, k3, k4 = jax.random.split(key, 4)

    # node features
    x = jax.random.normal(k1, (N, Fin), dtype=jnp.float32)

    # deterministic parameter init (shapes from nn.Linear(in_feat, out_feat))
    W = jax.random.normal(k2, (Fin, Fout), dtype=jnp.float32) * (1.0 / np.sqrt(Fin))
    b = jax.random.normal(k3, (1, Fout), dtype=jnp.float32) * 0.1
    beta = jnp.ones((1, 1), dtype=jnp.float32)   # GENConv beta=1.0 (softmax_sg)

    # random simple graph as a dense dst x src mask
    adj_mask = jax.random.bernoulli(k4, 0.05, (N, N))
    adj = adj_mask.astype(jnp.float32)

    # per-graph preprocessing (hoisted out of the per-call hot path)
    adj_p = pad_adjacency(adj)

    fwd = jax.jit(genconv_forward)
    out = fwd(x, adj_p, W, b, beta)
    jax.block_until_ready(out)

    # pure-JAX f32 edge-list reference (torch segment-softmax + scatter_add_ semantics)
    edges = np.argwhere(np.asarray(adj_mask))    # rows = (dst, src) like edge_index.T
    dst = jnp.asarray(edges[:, 0])
    src = jnp.asarray(edges[:, 1])
    msg = jnp.maximum(x[src], 0.0) + EPS
    logit = beta[0, 0] * msg
    seg_max = jax.ops.segment_max(logit, dst, num_segments=N)
    ee = jnp.exp(logit - seg_max[dst])
    den = jax.ops.segment_sum(ee, dst, num_segments=N)
    soft = ee / den[dst]
    h_ref = jax.ops.segment_sum(soft * msg, dst, num_segments=N)
    ref = h_ref @ W + b

    # bf16 MXU operands + approx reciprocal => compare at bf16-level tolerance
    np.testing.assert_allclose(np.asarray(out), np.asarray(ref), rtol=5e-2, atol=5e-2)
    print("KERNEL_OK")
</pallas_src>

<mosaic_0001>
module attributes {stable_mosaic.version = 11 : i64} {
  func.func @genconv_kernel(%arg0: i32, %arg1: i32, %arg2: memref<256x256xi8, #tpu.memory_space<vmem>>, %arg3: memref<256x256xbf16, #tpu.memory_space<vmem>>, %arg4: memref<128x128xbf16, #tpu.memory_space<vmem>>, %arg5: memref<1x128xf32, #tpu.memory_space<vmem>>, %arg6: memref<256x128xf32, #tpu.memory_space<vmem>>, %arg7: memref<256x256xf32, #tpu.memory_space<vmem>>) attributes {dimension_semantics = [#tpu.dimension_semantics<parallel>, #tpu.dimension_semantics<arbitrary>], iteration_bounds = array<i64: 1, 1>, scalar_prefetch = 0 : i64, scratch_operands = 1 : i64, tpu.core_type = #tpu.core_type<tc>, window_params = [{transform_indices = @transform_0, window_bounds = array<i64: 256, 256>}, {transform_indices = @transform_1, window_bounds = array<i64: 256, 256>}, {pipeline_mode = #tpu.pipeline_mode<synchronous>, transform_indices = @transform_2, window_bounds = array<i64: 128, 128>}, {pipeline_mode = #tpu.pipeline_mode<synchronous>, transform_indices = @transform_3, window_bounds = array<i64: 1, 128>}, {transform_indices = @transform_4, window_bounds = array<i64: 256, 128>}]} {
    %c0_i32 = arith.constant 0 : i32
    %0 = arith.cmpi eq, %arg1, %c0_i32 : i32
    %1 = arith.extui %0 : i1 to i32
    %c0_i32_0 = arith.constant 0 : i32
    %2 = arith.cmpi ne, %1, %c0_i32_0 : i32
    scf.if %2 {
      %cst_10 = arith.constant 0.000000e+00 : f32
      %14 = vector.broadcast %cst_10 : f32 to vector<256x256xf32>
      %c0_11 = arith.constant 0 : index
      %c0_12 = arith.constant 0 : index
      %15 = vector.load %arg7[%c0_11, %c0_12] : memref<256x256xf32, #tpu.memory_space<vmem>>, vector<256x256xf32>
      tpu.vector_store %arg7[%c0_11, %c0_12], %14 {strides = array<i32>} : memref<256x256xf32, #tpu.memory_space<vmem>>, vector<256x256xf32>,
    } else {
    }
    %c0 = arith.constant 0 : index
    %c0_1 = arith.constant 0 : index
    %3 = vector.load %arg2[%c0, %c0_1] : memref<256x256xi8, #tpu.memory_space<vmem>>, vector<256x256xi8>
    %4 = arith.sitofp %3 : vector<256x256xi8> to vector<256x256xf32>
    %5 = arith.truncf %4 : vector<256x256xf32> to vector<256x256xbf16>
    %c0_2 = arith.constant 0 : index
    %c0_3 = arith.constant 0 : index
    %6 = vector.load %arg7[%c0_2, %c0_3] : memref<256x256xf32, #tpu.memory_space<vmem>>, vector<256x256xf32>
    %c0_4 = arith.constant 0 : index
    %c0_5 = arith.constant 0 : index
    %7 = vector.load %arg3[%c0_4, %c0_5] : memref<256x256xbf16, #tpu.memory_space<vmem>>, vector<256x256xbf16>
    %cst = arith.constant dense<0.000000e+00> : vector<256x256xf32>
    %8 = tpu.matmul %5, %7, %cst {dimension_numbers = #tpu.dot_dimension_numbers<[1], [0], [0], [1], [0, 0, 1, 1], [], []>} : vector<256x256xbf16>, vector<256x256xbf16>, vector<256x256xf32> -> vector<256x256xf32>
    %9 = arith.addf %6, %8 : vector<256x256xf32>
    %c0_6 = arith.constant 0 : index
    %c0_7 = arith.constant 0 : index
    %10 = vector.load %arg7[%c0_6, %c0_7] : memref<256x256xf32, #tpu.memory_space<vmem>>, vector<256x256xf32>
    tpu.vector_store %arg7[%c0_6, %c0_7], %9 {strides = array<i32>} : memref<256x256xf32, #tpu.memory_space<vmem>>, vector<256x256xf32>,
    %c0_i32_8 = arith.constant 0 : i32
    %11 = arith.cmpi eq, %arg1, %c0_i32_8 : i32
    %12 = arith.extui %11 : i1 to i32
    %c0_i32_9 = arith.constant 0 : i32
    %13 = arith.cmpi ne, %12, %c0_i32_9 : i32
    scf.if %13 {
      %c0_10 = arith.constant 0 : index
      %c0_11 = arith.constant 0 : index
      %14 = vector.load %arg7[%c0_10, %c0_11] : memref<256x256xf32, #tpu.memory_space<vmem>>, vector<256x256xf32>
      %15 = vector.extract_strided_slice %14 {offsets = [0, 0], sizes = [256, 128], strides = [1, 1]} : vector<256x256xf32> to vector<256x128xf32>
      %16 = vector.extract_strided_slice %14 {offsets = [0, 128], sizes = [256, 128], strides = [1, 1]} : vector<256x256xf32> to vector<256x128xf32>
      %cst_12 = arith.constant 1.000000e-30 : f32
      %17 = vector.broadcast %cst_12 : f32 to vector<256x128xf32>
      %18 = arith.maximumf %15, %17 : vector<256x128xf32>
      %19 = tpu.reciprocal %18 {approx = true} : vector<256x128xf32> -> vector<256x128xf32>
      %20 = arith.mulf %16, %19 : vector<256x128xf32>
      %21 = arith.truncf %20 : vector<256x128xf32> to vector<256x128xbf16>
      %c0_13 = arith.constant 0 : index
      %c0_14 = arith.constant 0 : index
      %22 = vector.load %arg4[%c0_13, %c0_14] : memref<128x128xbf16, #tpu.memory_space<vmem>>, vector<128x128xbf16>
      %cst_15 = arith.constant dense<0.000000e+00> : vector<256x128xf32>
      %23 = tpu.matmul %21, %22, %cst_15 {dimension_numbers = #tpu.dot_dimension_numbers<[1], [0], [0], [1], [0, 0, 1, 1], [], []>} : vector<256x128xbf16>, vector<128x128xbf16>, vector<256x128xf32> -> vector<256x128xf32>
      %c0_16 = arith.constant 0 : index
      %c0_17 = arith.constant 0 : index
      %24 = vector.load %arg5[%c0_16, %c0_17] : memref<1x128xf32, #tpu.memory_space<vmem>>, vector<1x128xf32>
      %25 = vector.broadcast %24 : vector<1x128xf32> to vector<256x128xf32>
      %26 = arith.addf %23, %25 : vector<256x128xf32>
      %c0_18 = arith.constant 0 : index
      %c0_19 = arith.constant 0 : index
      %27 = vector.load %arg6[%c0_18, %c0_19] : memref<256x128xf32, #tpu.memory_space<vmem>>, vector<256x128xf32>
      tpu.vector_store %arg6[%c0_18, %c0_19], %26 {strides = array<i32>} : memref<256x128xf32, #tpu.memory_space<vmem>>, vector<256x128xf32>,
    } else {
    }
    return
  }
  func.func @transform_0(%arg0: i32, %arg1: i32) -> (i32, i32) {
    %c0_i32 = arith.constant 0 : i32
    return %arg0, %arg1 : i32, i32
  }
  func.func @transform_1(%arg0: i32, %arg1: i32) -> (i32, i32) {
    %c0_i32 = arith.constant 0 : i32
    %c0_i32_0 = arith.constant 0 : i32
    return %arg1, %c0_i32 : i32, i32
  }
  func.func @transform_2(%arg0: i32, %arg1: i32) -> (i32, i32) {
    %c0_i32 = arith.constant 0 : i32
    %c0_i32_0 = arith.constant 0 : i32
    %c0_i32_1 = arith.constant 0 : i32
    return %c0_i32, %c0_i32_0 : i32, i32
  }
  func.func @transform_3(%arg0: i32, %arg1: i32) -> (i32, i32) {
    %c0_i32 = arith.constant 0 : i32
    %c0_i32_0 = arith.constant 0 : i32
    %c0_i32_1 = arith.constant 0 : i32
    return %c0_i32, %c0_i32_0 : i32, i32
  }
  func.func @transform_4(%arg0: i32, %arg1: i32) -> (i32, i32) {
    %c0_i32 = arith.constant 0 : i32
    %c0_i32_0 = arith.constant 0 : i32
    return %arg0, %c0_i32 : i32, i32
  }
}

</mosaic_0001>

<llo_original>
// kernel: genconv_forward.1
$region0: #{genconv_forward.1}
  #allocation0 [shape = 'u32[]', space=smem, size = 0x4, offset = 0x4, fixed_abs, tag = 'smem constant byte address 0x4 - core index']
  #allocation1 [shape = 'u32[144,128]{1,0:T(1,128)}', space=vmem, size = 0x12000, scoped, tag = 'internal scratch']
  #allocation2 [shape = 'f32[256,256]{1,0:T(8,128)}', space=vmem, size = 0x40000, scoped, tag = 'scratch operand']
  %s0 = inlined_call_operand.vmem [shape: s8[256,256], index: 0, kind: input, shape index: {}]
  %s1 = inlined_call_operand.vmem [shape: bf16[256,256], index: 1, kind: input, shape index: {}]
  %s2 = inlined_call_operand.vmem [shape: bf16[128,128], index: 2, kind: input, shape index: {}]
  %s3 = inlined_call_operand.vmem [shape: f32[1,128], index: 3, kind: input, shape index: {}]
  %s4 = inlined_call_operand.vmem [shape: f32[256,128], index: 4, kind: output, shape index: {}]
  %s5 = sld [smem:[#allocation0]]
  $region34: #{genconv_forward.1} parent=0
    _
  %s7 = ssub.s32 1, %s5
  %s8 = scalar_select 0, %s7, %s5
  // Predicated region
  $region2: #{genconv_forward.1} parent=0 // pred_check
    _
  $region3: #{genconv_forward.1} parent=0 // pred_check_branch
    %10 = sbr.rel (0) target = $region5
  $region4: #{genconv_forward.1} parent=0 // pred_region
    _
  $region5: #{genconv_forward.1} parent=0 // pred_fallthru
    _
  // Predicated region
  $region6: #{genconv_forward.1} parent=0 // pred_check
    _
  $region7: #{genconv_forward.1} parent=0 // pred_check_branch
    %12 = sbr.rel (0) target = $region9
  $region8: #{genconv_forward.1} parent=0 // pred_region
    _
  $region9: #{genconv_forward.1} parent=0 // pred_fallthru
    _
  // Predicated region
  $region10: #{genconv_forward.1} parent=0 // pred_check
    _
  $region11: #{genconv_forward.1} parent=0 // pred_check_branch
    %14 = sbr.rel (0) target = $region13
  $region12: #{genconv_forward.1} parent=0 // pred_region
    _
  $region13: #{genconv_forward.1} parent=0 // pred_fallthru
    _
  // Predicated region
  $region14: #{genconv_forward.1} parent=0 // pred_check
    _
  $region15: #{genconv_forward.1} parent=0 // pred_check_branch
    %16 = sbr.rel (0) target = $region17
  $region16: #{genconv_forward.1} parent=0 // pred_region
    _
  $region17: #{genconv_forward.1} parent=0 // pred_fallthru
    _
  %p18 = scmp.eq.s32.totalorder 0, 0
  // Predicated region
  $region18: #{genconv_forward.1} parent=0 // pred_check
    %p19 = pneg %p18
  $region19: #{genconv_forward.1} parent=0 // pred_check_branch
    %21 = sbr.rel (%p19) target = $region21
  $region20: #{genconv_forward.1} parent=0 // pred_region
    %22 = vst [vmem:[#allocation2] sm:$0xff] 0.0
    %23 = vst [vmem:[#allocation2 + $0x8] sm:$0xff] 0.0
    %24 = vst [vmem:[#allocation2 + $0x10] sm:$0xff] 0.0
    %25 = vst [vmem:[#allocation2 + $0x18] sm:$0xff] 0.0
    %26 = vst [vmem:[#allocation2 + $0x20] sm:$0xff] 0.0
    %27 = vst [vmem:[#allocation2 + $0x28] sm:$0xff] 0.0
    %28 = vst [vmem:[#allocation2 + $0x30] sm:$0xff] 0.0
    %29 = vst [vmem:[#allocation2 + $0x38] sm:$0xff] 0.0
    %30 = vst [vmem:[#allocation2 + $0x40] sm:$0xff] 0.0
    %31 = vst [vmem:[#allocation2 + $0x48] sm:$0xff] 0.0
    %32 = vst [vmem:[#allocation2 + $0x50] sm:$0xff] 0.0
    %33 = vst [vmem:[#allocation2 + $0x58] sm:$0xff] 0.0
    %34 = vst [vmem:[#allocation2 + $0x60] sm:$0xff] 0.0
    %35 = vst [vmem:[#allocation2 + $0x68] sm:$0xff] 0.0
    %36 = vst [vmem:[#allocation2 + $0x70] sm:$0xff] 0.0
    %37 = vst [vmem:[#allocation2 + $0x78] sm:$0xff] 0.0
    %38 = vst [vmem:[#allocation2 + $0x80] sm:$0xff] 0.0
    %39 = vst [vmem:[#allocation2 + $0x88] sm:$0xff] 0.0
    %40 = vst [vmem:[#allocation2 + $0x90] sm:$0xff] 0.0
    %41 = vst [vmem:[#allocation2 + $0x98] sm:$0xff] 0.0
    %42 = vst [vmem:[#allocation2 + $0xa0] sm:$0xff] 0.0
    %43 = vst [vmem:[#allocation2 + $0xa8] sm:$0xff] 0.0
    %44 = vst [vmem:[#allocation2 + $0xb0] sm:$0xff] 0.0
    %45 = vst [vmem:[#allocation2 + $0xb8] sm:$0xff] 0.0
    %46 = vst [vmem:[#allocation2 + $0xc0] sm:$0xff] 0.0
    %47 = vst [vmem:[#allocation2 + $0xc8] sm:$0xff] 0.0
    %48 = vst [vmem:[#allocation2 + $0xd0] sm:$0xff] 0.0
    %49 = vst [vmem:[#allocation2 + $0xd8] sm:$0xff] 0.0
    %50 = vst [vmem:[#allocation2 + $0xe0] sm:$0xff] 0.0
    %51 = vst [vmem:[#allocation2 + $0xe8] sm:$0xff] 0.0
    %52 = vst [vmem:[#allocation2 + $0xf0] sm:$0xff] 0.0
    %53 = vst [vmem:[#allocation2 + $0xf8] sm:$0xff] 0.0
    %54 = vst [vmem:[#allocation2 + $0x100] sm:$0xff] 0.0
    %55 = vst [vmem:[#allocation2 + $0x108] sm:$0xff] 0.0
    %56 = vst [vmem:[#allocation2 + $0x110] sm:$0xff] 0.0
    %57 = vst [vmem:[#allocation2 + $0x118] sm:$0xff] 0.0
    %58 = vst [vmem:[#allocation2 + $0x120] sm:$0xff] 0.0
    %59 = vst [vmem:[#allocation2 + $0x128] sm:$0xff] 0.0
    %60 = vst [vmem:[#allocation2 + $0x130] sm:$0xff] 0.0
    %61 = vst [vmem:[#allocation2 + $0x138] sm:$0xff] 0.0
    %62 = vst [vmem:[#allocation2 + $0x140] sm:$0xff] 0.0
    %63 = vst [vmem:[#allocation2 + $0x148] sm:$0xff] 0.0
    %64 = vst [vmem:[#allocation2 + $0x150] sm:$0xff] 0.0
    %65 = vst [vmem:[#allocation2 + $0x158] sm:$0xff] 0.0
    %66 = vst [vmem:[#allocation2 + $0x160] sm:$0xff] 0.0
    %67 = vst [vmem:[#allocation2 + $0x168] sm:$0xff] 0.0
    %68 = vst [vmem:[#allocation2 + $0x170] sm:$0xff] 0.0
    %69 = vst [vmem:[#allocation2 + $0x178] sm:$0xff] 0.0
    %70 = vst [vmem:[#allocation2 + $0x180] sm:$0xff] 0.0
    %71 = vst [vmem:[#allocation2 + $0x188] sm:$0xff] 0.0
    %72 = vst [vmem:[#allocation2 + $0x190] sm:$0xff] 0.0
    %73 = vst [vmem:[#allocation2 + $0x198] sm:$0xff] 0.0
    %74 = vst [vmem:[#allocation2 + $0x1a0] sm:$0xff] 0.0
    %75 = vst [vmem:[#allocation2 + $0x1a8] sm:$0xff] 0.0
    %76 = vst [vmem:[#allocation2 + $0x1b0] sm:$0xff] 0.0
    %77 = vst [vmem:[#allocation2 + $0x1b8] sm:$0xff] 0.0
    %78 = vst [vmem:[#allocation2 + $0x1c0] sm:$0xff] 0.0
    %79 = vst [vmem:[#allocation2 + $0x1c8] sm:$0xff] 0.0
    %80 = vst [vmem:[#allocation2 + $0x1d0] sm:$0xff] 0.0
    %81 = vst [vmem:[#allocation2 + $0x1d8] sm:$0xff] 0.0
    %82 = vst [vmem:[#allocation2 + $0x1e0] sm:$0xff] 0.0
    %83 = vst [vmem:[#allocation2 + $0x1e8] sm:$0xff] 0.0
    %84 = vst [vmem:[#allocation2 + $0x1f0] sm:$0xff] 0.0
    %85 = vst [vmem:[#allocation2 + $0x1f8] sm:$0xff] 0.0
  $region21: #{genconv_forward.1} parent=0 // pred_fallthru
    _
  %v86 = vld [vmem:[%s0] sm:$0xff]
  %v87 = vld [vmem:[%s0 + $0x8] sm:$0xff]
  %v88 = vld [vmem:[%s0 + $0x10] sm:$0xff]
  %v89 = vld [vmem:[%s0 + $0x18] sm:$0xff]
  %v90 = vld [vmem:[%s0 + $0x20] sm:$0xff]
  %v91 = vld [vmem:[%s0 + $0x28] sm:$0xff]
  %v92 = vld [vmem:[%s0 + $0x30] sm:$0xff]
  %v93 = vld [vmem:[%s0 + $0x38] sm:$0xff]
  %v94 = vld [vmem:[%s0 + $0x40] sm:$0xff]
  %v95 = vld [vmem:[%s0 + $0x48] sm:$0xff]
  %v96 = vld [vmem:[%s0 + $0x50] sm:$0xff]
  %v97 = vld [vmem:[%s0 + $0x58] sm:$0xff]
  %v98 = vld [vmem:[%s0 + $0x60] sm:$0xff]
  %v99 = vld [vmem:[%s0 + $0x68] sm:$0xff]
  %v100 = vld [vmem:[%s0 + $0x70] sm:$0xff]
  %v101 = vld [vmem:[%s0 + $0x78] sm:$0xff]
  %v102 = vunpack.c.l.s8.bf16 %v86
  %v103 = vunpack.c.l.s8.bf16 %v87
  %v104 = vunpack.c.h.s8.bf16 %v86
  %v105 = vunpack.c.h.s8.bf16 %v87
  %v106 = vunpack.c.l.s8.bf16 %v88
  %v107 = vunpack.c.l.s8.bf16 %v89
  %v108 = vunpack.c.h.s8.bf16 %v88
  %v109 = vunpack.c.h.s8.bf16 %v89
  %v110 = vunpack.c.l.s8.bf16 %v90
  %v111 = vunpack.c.l.s8.bf16 %v91
  %v112 = vunpack.c.h.s8.bf16 %v90
  %v113 = vunpack.c.h.s8.bf16 %v91
  %v114 = vunpack.c.l.s8.bf16 %v92
  %v115 = vunpack.c.l.s8.bf16 %v93
  %v116 = vunpack.c.h.s8.bf16 %v92
  %v117 = vunpack.c.h.s8.bf16 %v93
  %v118 = vunpack.c.l.s8.bf16 %v94
  %v119 = vunpack.c.l.s8.bf16 %v95
  %v120 = vunpack.c.h.s8.bf16 %v94
  %v121 = vunpack.c.h.s8.bf16 %v95
  %v122 = vunpack.c.l.s8.bf16 %v96
  %v123 = vunpack.c.l.s8.bf16 %v97
  %v124 = vunpack.c.h.s8.bf16 %v96
  %v125 = vunpack.c.h.s8.bf16 %v97
  %v126 = vunpack.c.l.s8.bf16 %v98
  %v127 = vunpack.c.l.s8.bf16 %v99
  %v128 = vunpack.c.h.s8.bf16 %v98
  %v129 = vunpack.c.h.s8.bf16 %v99
  %v130 = vunpack.c.l.s8.bf16 %v100
  %v131 = vunpack.c.l.s8.bf16 %v101
  %v132 = vunpack.c.h.s8.bf16 %v100
  %v133 = vunpack.c.h.s8.bf16 %v101
  %v134 = vld [vmem:[#allocation2] sm:$0xff]
  %v135 = vld [vmem:[#allocation2 + $0x8] sm:$0xff]
  %v136 = vld [vmem:[#allocation2 + $0x10] sm:$0xff]
  %v137 = vld [vmem:[#allocation2 + $0x18] sm:$0xff]
  %v138 = vld [vmem:[#allocation2 + $0x20] sm:$0xff]
  %v139 = vld [vmem:[#allocation2 + $0x28] sm:$0xff]
  %v140 = vld [vmem:[#allocation2 + $0x30] sm:$0xff]
  %v141 = vld [vmem:[#allocation2 + $0x38] sm:$0xff]
  %v142 = vld [vmem:[#allocation2 + $0x40] sm:$0xff]
  %v143 = vld [vmem:[#allocation2 + $0x48] sm:$0xff]
  %v144 = vld [vmem:[#allocation2 + $0x50] sm:$0xff]
  %v145 = vld [vmem:[#allocation2 + $0x58] sm:$0xff]
  %v146 = vld [vmem:[#allocation2 + $0x60] sm:$0xff]
  %v147 = vld [vmem:[#allocation2 + $0x68] sm:$0xff]
  %v148 = vld [vmem:[#allocation2 + $0x70] sm:$0xff]
  %v149 = vld [vmem:[#allocation2 + $0x78] sm:$0xff]
  %v150 = vld [vmem:[#allocation2 + $0x80] sm:$0xff]
  %v151 = vld [vmem:[#allocation2 + $0x88] sm:$0xff]
  %v152 = vld [vmem:[#allocation2 + $0x90] sm:$0xff]
  %v153 = vld [vmem:[#allocation2 + $0x98] sm:$0xff]
  %v154 = vld [vmem:[#allocation2 + $0xa0] sm:$0xff]
  %v155 = vld [vmem:[#allocation2 + $0xa8] sm:$0xff]
  %v156 = vld [vmem:[#allocation2 + $0xb0] sm:$0xff]
  %v157 = vld [vmem:[#allocation2 + $0xb8] sm:$0xff]
  %v158 = vld [vmem:[#allocation2 + $0xc0] sm:$0xff]
  %v159 = vld [vmem:[#allocation2 + $0xc8] sm:$0xff]
  %v160 = vld [vmem:[#allocation2 + $0xd0] sm:$0xff]
  %v161 = vld [vmem:[#allocation2 + $0xd8] sm:$0xff]
  %v162 = vld [vmem:[#allocation2 + $0xe0] sm:$0xff]
  %v163 = vld [vmem:[#allocation2 + $0xe8] sm:$0xff]
  %v164 = vld [vmem:[#allocation2 + $0xf0] sm:$0xff]
  %v165 = vld [vmem:[#allocation2 + $0xf8] sm:$0xff]
  %v166 = vld [vmem:[#allocation2 + $0x100] sm:$0xff]
  %v167 = vld [vmem:[#allocation2 + $0x108] sm:$0xff]
  %v168 = vld [vmem:[#allocation2 + $0x110] sm:$0xff]
  %v169 = vld [vmem:[#allocation2 + $0x118] sm:$0xff]
  %v170 = vld [vmem:[#allocation2 + $0x120] sm:$0xff]
  %v171 = vld [vmem:[#allocation2 + $0x128] sm:$0xff]
  %v172 = vld [vmem:[#allocation2 + $0x130] sm:$0xff]
  %v173 = vld [vmem:[#allocation2 + $0x138] sm:$0xff]
  %v174 = vld [vmem:[#allocation2 + $0x140] sm:$0xff]
  %v175 = vld [vmem:[#allocation2 + $0x148] sm:$0xff]
  %v176 = vld [vmem:[#allocation2 + $0x150] sm:$0xff]
  %v177 = vld [vmem:[#allocation2 + $0x158] sm:$0xff]
  %v178 = vld [vmem:[#allocation2 + $0x160] sm:$0xff]
  %v179 = vld [vmem:[#allocation2 + $0x168] sm:$0xff]
  %v180 = vld [vmem:[#allocation2 + $0x170] sm:$0xff]
  %v181 = vld [vmem:[#allocation2 + $0x178] sm:$0xff]
  %v182 = vld [vmem:[#allocation2 + $0x180] sm:$0xff]
  %v183 = vld [vmem:[#allocation2 + $0x188] sm:$0xff]
  %v184 = vld [vmem:[#allocation2 + $0x190] sm:$0xff]
  %v185 = vld [vmem:[#allocation2 + $0x198] sm:$0xff]
  %v186 = vld [vmem:[#allocation2 + $0x1a0] sm:$0xff]
  %v187 = vld [vmem:[#allocation2 + $0x1a8] sm:$0xff]
  %v188 = vld [vmem:[#allocation2 + $0x1b0] sm:$0xff]
  %v189 = vld [vmem:[#allocation2 + $0x1b8] sm:$0xff]
  %v190 = vld [vmem:[#allocation2 + $0x1c0] sm:$0xff]
  %v191 = vld [vmem:[#allocation2 + $0x1c8] sm:$0xff]
  %v192 = vld [vmem:[#allocation2 + $0x1d0] sm:$0xff]
  %v193 = vld [vmem:[#allocation2 + $0x1d8] sm:$0xff]
  %v194 = vld [vmem:[#allocation2 + $0x1e0] sm:$0xff]
  %v195 = vld [vmem:[#allocation2 + $0x1e8] sm:$0xff]
  %v196 = vld [vmem:[#allocation2 + $0x1f0] sm:$0xff]
  %v197 = vld [vmem:[#allocation2 + $0x1f8] sm:$0xff]
  %v198 = vld [vmem:[%s1] sm:$0xff]
  %v199 = vld [vmem:[%s1 + $0x8] sm:$0xff]
  %v200 = vld [vmem:[%s1 + $0x10] sm:$0xff]
  %v201 = vld [vmem:[%s1 + $0x18] sm:$0xff]
  %v202 = vld [vmem:[%s1 + $0x20] sm:$0xff]
  %v203 = vld [vmem:[%s1 + $0x28] sm:$0xff]
  %v204 = vld [vmem:[%s1 + $0x30] sm:$0xff]
  %v205 = vld [vmem:[%s1 + $0x38] sm:$0xff]
  %v206 = vld [vmem:[%s1 + $0x40] sm:$0xff]
  %v207 = vld [vmem:[%s1 + $0x48] sm:$0xff]
  %v208 = vld [vmem:[%s1 + $0x50] sm:$0xff]
  %v209 = vld [vmem:[%s1 + $0x58] sm:$0xff]
  %v210 = vld [vmem:[%s1 + $0x60] sm:$0xff]
  %v211 = vld [vmem:[%s1 + $0x68] sm:$0xff]
  %v212 = vld [vmem:[%s1 + $0x70] sm:$0xff]
  %v213 = vld [vmem:[%s1 + $0x78] sm:$0xff]
  %v214 = vld [vmem:[%s1 + $0x80] sm:$0xff]
  %v215 = vld [vmem:[%s1 + $0x88] sm:$0xff]
  %v216 = vld [vmem:[%s1 + $0x90] sm:$0xff]
  %v217 = vld [vmem:[%s1 + $0x98] sm:$0xff]
  %v218 = vld [vmem:[%s1 + $0xa0] sm:$0xff]
  %v219 = vld [vmem:[%s1 + $0xa8] sm:$0xff]
  %v220 = vld [vmem:[%s1 + $0xb0] sm:$0xff]
  %v221 = vld [vmem:[%s1 + $0xb8] sm:$0xff]
  %v222 = vld [vmem:[%s1 + $0xc0] sm:$0xff]
  %v223 = vld [vmem:[%s1 + $0xc8] sm:$0xff]
  %v224 = vld [vmem:[%s1 + $0xd0] sm:$0xff]
  %v225 = vld [vmem:[%s1 + $0xd8] sm:$0xff]
  %v226 = vld [vmem:[%s1 + $0xe0] sm:$0xff]
  %v227 = vld [vmem:[%s1 + $0xe8] sm:$0xff]
  %v228 = vld [vmem:[%s1 + $0xf0] sm:$0xff]
  %v229 = vld [vmem:[%s1 + $0xf8] sm:$0xff]
  %v262 = vunpack.c.l.b16 %v198
  %v263 = vunpack.c.h.b16 %v198
  %v264 = vunpack.c.l.b16 %v199
  %v265 = vunpack.c.h.b16 %v199
  %v266 = vunpack.c.l.b16 %v200
  %v267 = vunpack.c.h.b16 %v200
  %v268 = vunpack.c.l.b16 %v201
  %v269 = vunpack.c.h.b16 %v201
  %v270 = vunpack.c.l.b16 %v202
  %v271 = vunpack.c.h.b16 %v202
  %v272 = vunpack.c.l.b16 %v203
  %v273 = vunpack.c.h.b16 %v203
  %v274 = vunpack.c.l.b16 %v204
  %v275 = vunpack.c.h.b16 %v204
  %v276 = vunpack.c.l.b16 %v205
  %v277 = vunpack.c.h.b16 %v205
  %v278 = vunpack.c.l.b16 %v206
  %v279 = vunpack.c.h.b16 %v206
  %v280 = vunpack.c.l.b16 %v207
  %v281 = vunpack.c.h.b16 %v207
  %v282 = vunpack.c.l.b16 %v208
  %v283 = vunpack.c.h.b16 %v208
  %v284 = vunpack.c.l.b16 %v209
  %v285 = vunpack.c.h.b16 %v209
  %v286 = vunpack.c.l.b16 %v210
  %v287 = vunpack.c.h.b16 %v210
  %v288 = vunpack.c.l.b16 %v211
  %v289 = vunpack.c.h.b16 %v211
  %v290 = vunpack.c.l.b16 %v212
  %v291 = vunpack.c.h.b16 %v212
  %v292 = vunpack.c.l.b16 %v213
  %v293 = vunpack.c.h.b16 %v213
  %v294 = vunpack.c.l.b16 %v214
  %v295 = vunpack.c.h.b16 %v214
  %v296 = vunpack.c.l.b16 %v215
  %v297 = vunpack.c.h.b16 %v215
  %v298 = vunpack.c.l.b16 %v216
  %v299 = vunpack.c.h.b16 %v216
  %v300 = vunpack.c.l.b16 %v217
  %v301 = vunpack.c.h.b16 %v217
  %v302 = vunpack.c.l.b16 %v218
  %v303 = vunpack.c.h.b16 %v218
  %v304 = vunpack.c.l.b16 %v219
  %v305 = vunpack.c.h.b16 %v219
  %v306 = vunpack.c.l.b16 %v220
  %v307 = vunpack.c.h.b16 %v220
  %v308 = vunpack.c.l.b16 %v221
  %v309 = vunpack.c.h.b16 %v221
  %v310 = vunpack.c.l.b16 %v222
  %v311 = vunpack.c.h.b16 %v222
  %v312 = vunpack.c.l.b16 %v223
  %v313 = vunpack.c.h.b16 %v223
  %v314 = vunpack.c.l.b16 %v224
  %v315 = vunpack.c.h.b16 %v224
  %v316 = vunpack.c.l.b16 %v225
  %v317 = vunpack.c.h.b16 %v225
  %v318 = vunpack.c.l.b16 %v226
  %v319 = vunpack.c.h.b16 %v226
  %v320 = vunpack.c.l.b16 %v227
  %v321 = vunpack.c.h.b16 %v227
  %v322 = vunpack.c.l.b16 %v228
  %v323 = vunpack.c.h.b16 %v228
  %v324 = vunpack.c.l.b16 %v229
  %v325 = vunpack.c.h.b16 %v229
  %v326 = vpack.c.b16 %v264, %v262
  %v327 = vpack.c.b16 %v265, %v263
  %v328 = vpack.c.b16 %v268, %v266
  %v329 = vpack.c.b16 %v269, %v267
  %v330 = vpack.c.b16 %v272, %v270
  %v331 = vpack.c.b16 %v273, %v271
  %v332 = vpack.c.b16 %v276, %v274
  %v333 = vpack.c.b16 %v277, %v275
  %v334 = vpack.c.b16 %v280, %v278
  %v335 = vpack.c.b16 %v281, %v279
  %v336 = vpack.c.b16 %v284, %v282
  %v337 = vpack.c.b16 %v285, %v283
  %v338 = vpack.c.b16 %v288, %v286
  %v339 = vpack.c.b16 %v289, %v287
  %v340 = vpack.c.b16 %v292, %v290
  %v341 = vpack.c.b16 %v293, %v291
  %v342 = vpack.c.b16 %v296, %v294
  %v343 = vpack.c.b16 %v297, %v295
  %v344 = vpack.c.b16 %v300, %v298
  %v345 = vpack.c.b16 %v301, %v299
  %v346 = vpack.c.b16 %v304, %v302
  %v347 = vpack.c.b16 %v305, %v303
  %v348 = vpack.c.b16 %v308, %v306
  %v349 = vpack.c.b16 %v309, %v307
  %v350 = vpack.c.b16 %v312, %v310
  %v351 = vpack.c.b16 %v313, %v311
  %v352 = vpack.c.b16 %v316, %v314
  %v353 = vpack.c.b16 %v317, %v315
  %v354 = vpack.c.b16 %v320, %v318
  %v355 = vpack.c.b16 %v321, %v319
  %v356 = vpack.c.b16 %v324, %v322
  %v357 = vpack.c.b16 %v325, %v323
  %390 = vmatprep.subr.bf16.mxu0 %v327
  %391 = vmatpush1.bf16.msra.mxu0 %v326
  %392 = vmatprep.subr.bf16.mxu0 %v329
  %393 = vmatpush1.bf16.msra.mxu0 %v328
  %394 = vmatprep.subr.bf16.mxu0 %v331
  %395 = vmatpush1.bf16.msra.mxu0 %v330
  %396 = vmatprep.subr.bf16.mxu0 %v333
  %397 = vmatpush1.bf16.msra.mxu0 %v332
  %398 = vmatprep.subr.bf16.mxu0 %v335
  %399 = vmatpush1.bf16.msra.mxu0 %v334
  %400 = vmatprep.subr.bf16.mxu0 %v337
  %401 = vmatpush1.bf16.msra.mxu0 %v336
  %402 = vmatprep.subr.bf16.mxu0 %v339
  %403 = vmatpush1.bf16.msra.mxu0 %v338
  %404 = vmatprep.subr.bf16.mxu0 %v341
  %405 = vmatpush1.bf16.msra.mxu0 %v340
  %406 = vmatprep.subr.bf16.mxu0 %v343
  %407 = vmatpush1.bf16.msra.mxu0 %v342
  %408 = vmatprep.subr.bf16.mxu0 %v345
  %409 = vmatpush1.bf16.msra.mxu0 %v344
  %410 = vmatprep.subr.bf16.mxu0 %v347
  %411 = vmatpush1.bf16.msra.mxu0 %v346
  %412 = vmatprep.subr.bf16.mxu0 %v349
  %413 = vmatpush1.bf16.msra.mxu0 %v348
  %414 = vmatprep.subr.bf16.mxu0 %v351
  %415 = vmatpush1.bf16.msra.mxu0 %v350
  %416 = vmatprep.subr.bf16.mxu0 %v353
  %417 = vmatpush1.bf16.msra.mxu0 %v352
  %418 = vmatprep.subr.bf16.mxu0 %v355
  %419 = vmatpush1.bf16.msra.mxu0 %v354
  %420 = vmatprep.subr.bf16.mxu0 %v357
  %421 = vmatpush1.bf16.msra.mxu0 %v356
  %422 = vmatprep.mubr.bf16.mxu0 %v103
  %423 = vmatmul.mubr.bf16.gmra.mrb[0].mxu0 %v102
  %v424 = vpop.f32.mrb[0].mxu0
  %v425 = vadd.f32 0.0, %v424
  %v426 = vpop.f32.mrb[0].mxu0
  %v427 = vadd.f32 0.0, %v426
  %v428 = vpop.f32.mrb[0].mxu0
  %v429 = vadd.f32 0.0, %v428
  %v430 = vpop.f32.mrb[0].mxu0
  %v431 = vadd.f32 0.0, %v430
  %432 = vmatprep.mubr.bf16.mxu0 %v105
  %433 = vmatmul.mubr.bf16.gmra.mrb[0].mxu0 %v104
  %v434 = vpop.f32.mrb[0].mxu0
  %v435 = vadd.f32 0.0, %v434
  %v436 = vpop.f32.mrb[0].mxu0
  %v437 = vadd.f32 0.0, %v436
  %v438 = vpop.f32.mrb[0].mxu0
  %v439 = vadd.f32 0.0, %v438
  %v440 = vpop.f32.mrb[0].mxu0
  %v441 = vadd.f32 0.0, %v440
  %442 = vmatprep.mubr.bf16.mxu0 %v107
  %443 = vmatmul.mubr.bf16.gmra.mrb[0].mxu0 %v106
  %v444 = vpop.f32.mrb[0].mxu0
  %v445 = vadd.f32 0.0, %v444
  %v446 = vpop.f32.mrb[0].mxu0
  %v447 = vadd.f32 0.0, %v446
  %v448 = vpop.f32.mrb[0].mxu0
  %v449 = vadd.f32 0.0, %v448
  %v450 = vpop.f32.mrb[0].mxu0
  %v451 = vadd.f32 0.0, %v450
  %452 = vmatprep.mubr.bf16.mxu0 %v109
  %453 = vmatmul.mubr.bf16.gmra.mrb[0].mxu0 %v108
  %v454 = vpop.f32.mrb[0].mxu0
  %v455 = vadd.f32 0.0, %v454
  %v456 = vpop.f32.mrb[0].mxu0
  %v457 = vadd.f32 0.0, %v456
  %v458 = vpop.f32.mrb[0].mxu0
  %v459 = vadd.f32 0.0, %v458
  %v460 = vpop.f32.mrb[0].mxu0
  %v461 = vadd.f32 0.0, %v460
  %462 = vmatprep.mubr.bf16.mxu0 %v111
  %463 = vmatmul.mubr.bf16.gmra.mrb[0].mxu0 %v110
  %v464 = vpop.f32.mrb[0].mxu0
  %v465 = vadd.f32 0.0, %v464
  %v466 = vpop.f32.mrb[0].mxu0
  %v467 = vadd.f32 0.0, %v466
  %v468 = vpop.f32.mrb[0].mxu0
  %v469 = vadd.f32 0.0, %v468
  %v470 = vpop.f32.mrb[0].mxu0
  %v471 = vadd.f32 0.0, %v470
  %472 = vmatprep.mubr.bf16.mxu0 %v113
  %473 = vmatmul.mubr.bf16.gmra.mrb[0].mxu0 %v112
  %v474 = vpop.f32.mrb[0].mxu0
  %v475 = vadd.f32 0.0, %v474
  %v476 = vpop.f32.mrb[0].mxu0
  %v477 = vadd.f32 0.0, %v476
  %v478 = vpop.f32.mrb[0].mxu0
  %v479 = vadd.f32 0.0, %v478
  %v480 = vpop.f32.mrb[0].mxu0
  %v481 = vadd.f32 0.0, %v480
  %482 = vmatprep.mubr.bf16.mxu0 %v115
  %483 = vmatmul.mubr.bf16.gmra.mrb[0].mxu0 %v114
  %v484 = vpop.f32.mrb[0].mxu0
  %v485 = vadd.f32 0.0, %v484
  %v486 = vpop.f32.mrb[0].mxu0
  %v487 = vadd.f32 0.0, %v486
  %v488 = vpop.f32.mrb[0].mxu0
  %v489 = vadd.f32 0.0, %v488
  %v490 = vpop.f32.mrb[0].mxu0
  %v491 = vadd.f32 0.0, %v490
  %492 = vmatprep.mubr.bf16.mxu0 %v117
  %493 = vmatmul.mubr.bf16.gmra.mrb[0].mxu0 %v116
  %v494 = vpop.f32.mrb[0].mxu0
  %v495 = vadd.f32 0.0, %v494
  %v496 = vpop.f32.mrb[0].mxu0
  %v497 = vadd.f32 0.0, %v496
  %v498 = vpop.f32.mrb[0].mxu0
  %v499 = vadd.f32 0.0, %v498
  %v500 = vpop.f32.mrb[0].mxu0
  %v501 = vadd.f32 0.0, %v500
  %502 = vmatprep.mubr.bf16.mxu0 %v119
  %503 = vmatmul.mubr.bf16.gmra.mrb[0].mxu0 %v118
  %v504 = vpop.f32.mrb[0].mxu0
  %v505 = vadd.f32 0.0, %v504
  %v506 = vpop.f32.mrb[0].mxu0
  %v507 = vadd.f32 0.0, %v506
  %v508 = vpop.f32.mrb[0].mxu0
  %v509 = vadd.f32 0.0, %v508
  %v510 = vpop.f32.mrb[0].mxu0
  %v511 = vadd.f32 0.0, %v510
  %512 = vmatprep.mubr.bf16.mxu0 %v121
  %513 = vmatmul.mubr.bf16.gmra.mrb[0].mxu0 %v120
  %v514 = vpop.f32.mrb[0].mxu0
  %v515 = vadd.f32 0.0, %v514
  %v516 = vpop.f32.mrb[0].mxu0
  %v517 = vadd.f32 0.0, %v516
  %v518 = vpop.f32.mrb[0].mxu0
  %v519 = vadd.f32 0.0, %v518
  %v520 = vpop.f32.mrb[0].mxu0
  %v521 = vadd.f32 0.0, %v520
  %522 = vmatprep.mubr.bf16.mxu0 %v123
  %523 = vmatmul.mubr.bf16.gmra.mrb[0].mxu0 %v122
  %v524 = vpop.f32.mrb[0].mxu0
  %v525 = vadd.f32 0.0, %v524
  %v526 = vpop.f32.mrb[0].mxu0
  %v527 = vadd.f32 0.0, %v526
  %v528 = vpop.f32.mrb[0].mxu0
  %v529 = vadd.f32 0.0, %v528
  %v530 = vpop.f32.mrb[0].mxu0
  %v531 = vadd.f32 0.0, %v530
  %532 = vmatprep.mubr.bf16.mxu0 %v125
  %533 = vmatmul.mubr.bf16.gmra.mrb[0].mxu0 %v124
  %v534 = vpop.f32.mrb[0].mxu0
  %v535 = vadd.f32 0.0, %v534
  %v536 = vpop.f32.mrb[0].mxu0
  %v537 = vadd.f32 0.0, %v536
  %v538 = vpop.f32.mrb[0].mxu0
  %v539 = vadd.f32 0.0, %v538
  %v540 = vpop.f32.mrb[0].mxu0
  %v541 = vadd.f32 0.0, %v540
  %542 = vmatprep.mubr.bf16.mxu0 %v127
  %543 = vmatmul.mubr.bf16.gmra.mrb[0].mxu0 %v126
  %v544 = vpop.f32.mrb[0].mxu0
  %v545 = vadd.f32 0.0, %v544
  %v546 = vpop.f32.mrb[0].mxu0
  %v547 = vadd.f32 0.0, %v546
  %v548 = vpop.f32.mrb[0].mxu0
  %v549 = vadd.f32 0.0, %v548
  %v550 = vpop.f32.mrb[0].mxu0
  %v551 = vadd.f32 0.0, %v550
  %552 = vmatprep.mubr.bf16.mxu0 %v129
  %553 = vmatmul.mubr.bf16.gmra.mrb[0].mxu0 %v128
  %v554 = vpop.f32.mrb[0].mxu0
  %v555 = vadd.f32 0.0, %v554
  %v556 = vpop.f32.mrb[0].mxu0
  %v557 = vadd.f32 0.0, %v556
  %v558 = vpop.f32.mrb[0].mxu0
  %v559 = vadd.f32 0.0, %v558
  %v560 = vpop.f32.mrb[0].mxu0
  %v561 = vadd.f32 0.0, %v560
  %562 = vmatprep.mubr.bf16.mxu0 %v131
  %563 = vmatmul.mubr.bf16.gmra.mrb[0].mxu0 %v130
  %v564 = vpop.f32.mrb[0].mxu0
  %v565 = vadd.f32 0.0, %v564
  %v566 = vpop.f32.mrb[0].mxu0
  %v567 = vadd.f32 0.0, %v566
  %v568 = vpop.f32.mrb[0].mxu0
  %v569 = vadd.f32 0.0, %v568
  %v570 = vpop.f32.mrb[0].mxu0
  %v571 = vadd.f32 0.0, %v570
  %572 = vmatprep.mubr.bf16.mxu0 %v133
  %573 = vmatmul.mubr.bf16.gmra.mrb[0].mxu0 %v132
  %v574 = vpop.f32.mrb[0].mxu0
  %v575 = vadd.f32 0.0, %v574
  %v576 = vpop.f32.mrb[0].mxu0
  %v577 = vadd.f32 0.0, %v576
  %v578 = vpop.f32.mrb[0].mxu0
  %v579 = vadd.f32 0.0, %v578
  %v580 = vpop.f32.mrb[0].mxu0
  %v581 = vadd.f32 0.0, %v580
  %582 = vdwg.mxu0
  %v583 = vadd.f32 %v134, %v425
  %v584 = vadd.f32 %v135, %v427
  %v585 = vadd.f32 %v136, %v429
  %v586 = vadd.f32 %v137, %v431
  %v587 = vadd.f32 %v138, %v435
  %v588 = vadd.f32 %v139, %v437
  %v589 = vadd.f32 %v140, %v439
  %v590 = vadd.f32 %v141, %v441
  %v591 = vadd.f32 %v142, %v445
  %v592 = vadd.f32 %v143, %v447
  %v593 = vadd.f32 %v144, %v449
  %v594 = vadd.f32 %v145, %v451
  %v595 = vadd.f32 %v146, %v455
  %v596 = vadd.f32 %v147, %v457
  %v597 = vadd.f32 %v148, %v459
  %v598 = vadd.f32 %v149, %v461
  %v599 = vadd.f32 %v150, %v465
  %v600 = vadd.f32 %v151, %v467
  %v601 = vadd.f32 %v152, %v469
  %v602 = vadd.f32 %v153, %v471
  %v603 = vadd.f32 %v154, %v475
  %v604 = vadd.f32 %v155, %v477
  %v605 = vadd.f32 %v156, %v479
  %v606 = vadd.f32 %v157, %v481
  %v607 = vadd.f32 %v158, %v485
  %v608 = vadd.f32 %v159, %v487
  %v609 = vadd.f32 %v160, %v489
  %v610 = vadd.f32 %v161, %v491
  %v611 = vadd.f32 %v162, %v495
  %v612 = vadd.f32 %v163, %v497
  %v613 = vadd.f32 %v164, %v499
  %v614 = vadd.f32 %v165, %v501
  %v615 = vadd.f32 %v166, %v505
  %v616 = vadd.f32 %v167, %v507
  %v617 = vadd.f32 %v168, %v509
  %v618 = vadd.f32 %v169, %v511
  %v619 = vadd.f32 %v170, %v515
  %v620 = vadd.f32 %v171, %v517
  %v621 = vadd.f32 %v172, %v519
  %v622 = vadd.f32 %v173, %v521
  %v623 = vadd.f32 %v174, %v525
  %v624 = vadd.f32 %v175, %v527
  %v625 = vadd.f32 %v176, %v529
  %v626 = vadd.f32 %v177, %v531
  %v627 = vadd.f32 %v178, %v535
  %v628 = vadd.f32 %v179, %v537
  %v629 = vadd.f32 %v180, %v539
  %v630 = vadd.f32 %v181, %v541
  %v631 = vadd.f32 %v182, %v545
  %v632 = vadd.f32 %v183, %v547
  %v633 = vadd.f32 %v184, %v549
  %v634 = vadd.f32 %v185, %v551
  %v635 = vadd.f32 %v186, %v555
  %v636 = vadd.f32 %v187, %v557
  %v637 = vadd.f32 %v188, %v559
  %v638 = vadd.f32 %v189, %v561
  %v639 = vadd.f32 %v190, %v565
  %v640 = vadd.f32 %v191, %v567
  %v641 = vadd.f32 %v192, %v569
  %v642 = vadd.f32 %v193, %v571
  %v643 = vadd.f32 %v194, %v575
  %v644 = vadd.f32 %v195, %v577
  %v645 = vadd.f32 %v196, %v579
  %v646 = vadd.f32 %v197, %v581
  %647 = vst [vmem:[#allocation2] sm:$0xff] %v583
  %648 = vst [vmem:[#allocation2 + $0x8] sm:$0xff] %v584
  %649 = vst [vmem:[#allocation2 + $0x10] sm:$0xff] %v585
  %650 = vst [vmem:[#allocation2 + $0x18] sm:$0xff] %v586
  %651 = vst [vmem:[#allocation2 + $0x20] sm:$0xff] %v587
  %652 = vst [vmem:[#allocation2 + $0x28] sm:$0xff] %v588
  %653 = vst [vmem:[#allocation2 + $0x30] sm:$0xff] %v589
  %654 = vst [vmem:[#allocation2 + $0x38] sm:$0xff] %v590
  %655 = vst [vmem:[#allocation2 + $0x40] sm:$0xff] %v591
  %656 = vst [vmem:[#allocation2 + $0x48] sm:$0xff] %v592
  %657 = vst [vmem:[#allocation2 + $0x50] sm:$0xff] %v593
  %658 = vst [vmem:[#allocation2 + $0x58] sm:$0xff] %v594
  %659 = vst [vmem:[#allocation2 + $0x60] sm:$0xff] %v595
  %660 = vst [vmem:[#allocation2 + $0x68] sm:$0xff] %v596
  %661 = vst [vmem:[#allocation2 + $0x70] sm:$0xff] %v597
  %662 = vst [vmem:[#allocation2 + $0x78] sm:$0xff] %v598
  %663 = vst [vmem:[#allocation2 + $0x80] sm:$0xff] %v599
  %664 = vst [vmem:[#allocation2 + $0x88] sm:$0xff] %v600
  %665 = vst [vmem:[#allocation2 + $0x90] sm:$0xff] %v601
  %666 = vst [vmem:[#allocation2 + $0x98] sm:$0xff] %v602
  %667 = vst [vmem:[#allocation2 + $0xa0] sm:$0xff] %v603
  %668 = vst [vmem:[#allocation2 + $0xa8] sm:$0xff] %v604
  %669 = vst [vmem:[#allocation2 + $0xb0] sm:$0xff] %v605
  %670 = vst [vmem:[#allocation2 + $0xb8] sm:$0xff] %v606
  %671 = vst [vmem:[#allocation2 + $0xc0] sm:$0xff] %v607
  %672 = vst [vmem:[#allocation2 + $0xc8] sm:$0xff] %v608
  %673 = vst [vmem:[#allocation2 + $0xd0] sm:$0xff] %v609
  %674 = vst [vmem:[#allocation2 + $0xd8] sm:$0xff] %v610
  %675 = vst [vmem:[#allocation2 + $0xe0] sm:$0xff] %v611
  %676 = vst [vmem:[#allocation2 + $0xe8] sm:$0xff] %v612
  %677 = vst [vmem:[#allocation2 + $0xf0] sm:$0xff] %v613
  %678 = vst [vmem:[#allocation2 + $0xf8] sm:$0xff] %v614
  %679 = vst [vmem:[#allocation2 + $0x100] sm:$0xff] %v615
  %680 = vst [vmem:[#allocation2 + $0x108] sm:$0xff] %v616
  %681 = vst [vmem:[#allocation2 + $0x110] sm:$0xff] %v617
  %682 = vst [vmem:[#allocation2 + $0x118] sm:$0xff] %v618
  %683 = vst [vmem:[#allocation2 + $0x120] sm:$0xff] %v619
  %684 = vst [vmem:[#allocation2 + $0x128] sm:$0xff] %v620
  %685 = vst [vmem:[#allocation2 + $0x130] sm:$0xff] %v621
  %686 = vst [vmem:[#allocation2 + $0x138] sm:$0xff] %v622
  %687 = vst [vmem:[#allocation2 + $0x140] sm:$0xff] %v623
  %688 = vst [vmem:[#allocation2 + $0x148] sm:$0xff] %v624
  %689 = vst [vmem:[#allocation2 + $0x150] sm:$0xff] %v625
  %690 = vst [vmem:[#allocation2 + $0x158] sm:$0xff] %v626
  %691 = vst [vmem:[#allocation2 + $0x160] sm:$0xff] %v627
  %692 = vst [vmem:[#allocation2 + $0x168] sm:$0xff] %v628
  %693 = vst [vmem:[#allocation2 + $0x170] sm:$0xff] %v629
  %694 = vst [vmem:[#allocation2 + $0x178] sm:$0xff] %v630
  %695 = vst [vmem:[#allocation2 + $0x180] sm:$0xff] %v631
  %696 = vst [vmem:[#allocation2 + $0x188] sm:$0xff] %v632
  %697 = vst [vmem:[#allocation2 + $0x190] sm:$0xff] %v633
  %698 = vst [vmem:[#allocation2 + $0x198] sm:$0xff] %v634
  %699 = vst [vmem:[#allocation2 + $0x1a0] sm:$0xff] %v635
  %700 = vst [vmem:[#allocation2 + $0x1a8] sm:$0xff] %v636
  %701 = vst [vmem:[#allocation2 + $0x1b0] sm:$0xff] %v637
  %702 = vst [vmem:[#allocation2 + $0x1b8] sm:$0xff] %v638
  %703 = vst [vmem:[#allocation2 + $0x1c0] sm:$0xff] %v639
  %704 = vst [vmem:[#allocation2 + $0x1c8] sm:$0xff] %v640
  %705 = vst [vmem:[#allocation2 + $0x1d0] sm:$0xff] %v641
  %706 = vst [vmem:[#allocation2 + $0x1d8] sm:$0xff] %v642
  %707 = vst [vmem:[#allocation2 + $0x1e0] sm:$0xff] %v643
  %708 = vst [vmem:[#allocation2 + $0x1e8] sm:$0xff] %v644
  %709 = vst [vmem:[#allocation2 + $0x1f0] sm:$0xff] %v645
  %710 = vst [vmem:[#allocation2 + $0x1f8] sm:$0xff] %v646
  // Predicated region
  $region22: #{genconv_forward.1} parent=0 // pred_check
    %p711 = pneg %p18
  $region23: #{genconv_forward.1} parent=0 // pred_check_branch
    %713 = sbr.rel (%p711) target = $region25
  $region24: #{genconv_forward.1} parent=0 // pred_region
    %v714 = vld [vmem:[#allocation2] sm:$0xff]
    %v715 = vld [vmem:[#allocation2 + $0x8] sm:$0xff]
    %v716 = vld [vmem:[#allocation2 + $0x10] sm:$0xff]
    %v717 = vld [vmem:[#allocation2 + $0x18] sm:$0xff]
    %v718 = vld [vmem:[#allocation2 + $0x20] sm:$0xff]
    %v719 = vld [vmem:[#allocation2 + $0x28] sm:$0xff]
    %v720 = vld [vmem:[#allocation2 + $0x30] sm:$0xff]
    %v721 = vld [vmem:[#allocation2 + $0x38] sm:$0xff]
    %v722 = vld [vmem:[#allocation2 + $0x40] sm:$0xff]
    %v723 = vld [vmem:[#allocation2 + $0x48] sm:$0xff]
    %v724 = vld [vmem:[#allocation2 + $0x50] sm:$0xff]
    %v725 = vld [vmem:[#allocation2 + $0x58] sm:$0xff]
    %v726 = vld [vmem:[#allocation2 + $0x60] sm:$0xff]
    %v727 = vld [vmem:[#allocation2 + $0x68] sm:$0xff]
    %v728 = vld [vmem:[#allocation2 + $0x70] sm:$0xff]
    %v729 = vld [vmem:[#allocation2 + $0x78] sm:$0xff]
    %v730 = vld [vmem:[#allocation2 + $0x80] sm:$0xff]
    %v731 = vld [vmem:[#allocation2 + $0x88] sm:$0xff]
    %v732 = vld [vmem:[#allocation2 + $0x90] sm:$0xff]
    %v733 = vld [vmem:[#allocation2 + $0x98] sm:$0xff]
    %v734 = vld [vmem:[#allocation2 + $0xa0] sm:$0xff]
    %v735 = vld [vmem:[#allocation2 + $0xa8] sm:$0xff]
    %v736 = vld [vmem:[#allocation2 + $0xb0] sm:$0xff]
    %v737 = vld [vmem:[#allocation2 + $0xb8] sm:$0xff]
    %v738 = vld [vmem:[#allocation2 + $0xc0] sm:$0xff]
    %v739 = vld [vmem:[#allocation2 + $0xc8] sm:$0xff]
    %v740 = vld [vmem:[#allocation2 + $0xd0] sm:$0xff]
    %v741 = vld [vmem:[#allocation2 + $0xd8] sm:$0xff]
    %v742 = vld [vmem:[#allocation2 + $0xe0] sm:$0xff]
    %v743 = vld [vmem:[#allocation2 + $0xe8] sm:$0xff]
    %v744 = vld [vmem:[#allocation2 + $0xf0] sm:$0xff]
    %v745 = vld [vmem:[#allocation2 + $0xf8] sm:$0xff]
    %v746 = vld [vmem:[#allocation2 + $0x100] sm:$0xff]
    %v747 = vld [vmem:[#allocation2 + $0x108] sm:$0xff]
    %v748 = vld [vmem:[#allocation2 + $0x110] sm:$0xff]
    %v749 = vld [vmem:[#allocation2 + $0x118] sm:$0xff]
    %v750 = vld [vmem:[#allocation2 + $0x120] sm:$0xff]
    %v751 = vld [vmem:[#allocation2 + $0x128] sm:$0xff]
    %v752 = vld [vmem:[#allocation2 + $0x130] sm:$0xff]
    %v753 = vld [vmem:[#allocation2 + $0x138] sm:$0xff]
    %v754 = vld [vmem:[#allocation2 + $0x140] sm:$0xff]
    %v755 = vld [vmem:[#allocation2 + $0x148] sm:$0xff]
    %v756 = vld [vmem:[#allocation2 + $0x150] sm:$0xff]
    %v757 = vld [vmem:[#allocation2 + $0x158] sm:$0xff]
    %v758 = vld [vmem:[#allocation2 + $0x160] sm:$0xff]
    %v759 = vld [vmem:[#allocation2 + $0x168] sm:$0xff]
    %v760 = vld [vmem:[#allocation2 + $0x170] sm:$0xff]
    %v761 = vld [vmem:[#allocation2 + $0x178] sm:$0xff]
    %v762 = vld [vmem:[#allocation2 + $0x180] sm:$0xff]
    %v763 = vld [vmem:[#allocation2 + $0x188] sm:$0xff]
    %v764 = vld [vmem:[#allocation2 + $0x190] sm:$0xff]
    %v765 = vld [vmem:[#allocation2 + $0x198] sm:$0xff]
    %v766 = vld [vmem:[#allocation2 + $0x1a0] sm:$0xff]
    %v767 = vld [vmem:[#allocation2 + $0x1a8] sm:$0xff]
    %v768 = vld [vmem:[#allocation2 + $0x1b0] sm:$0xff]
    %v769 = vld [vmem:[#allocation2 + $0x1b8] sm:$0xff]
    %v770 = vld [vmem:[#allocation2 + $0x1c0] sm:$0xff]
    %v771 = vld [vmem:[#allocation2 + $0x1c8] sm:$0xff]
    %v772 = vld [vmem:[#allocation2 + $0x1d0] sm:$0xff]
    %v773 = vld [vmem:[#allocation2 + $0x1d8] sm:$0xff]
    %v774 = vld [vmem:[#allocation2 + $0x1e0] sm:$0xff]
    %v775 = vld [vmem:[#allocation2 + $0x1e8] sm:$0xff]
    %v776 = vld [vmem:[#allocation2 + $0x1f0] sm:$0xff]
    %v777 = vld [vmem:[#allocation2 + $0x1f8] sm:$0xff]
    %v778 = vmax.f32 %v714, 1e-30
    %v779 = vmax.f32 %v716, 1e-30
    %v780 = vmax.f32 %v718, 1e-30
    %v781 = vmax.f32 %v720, 1e-30
    %v782 = vmax.f32 %v722, 1e-30
    %v783 = vmax.f32 %v724, 1e-30
    %v784 = vmax.f32 %v726, 1e-30
    %v785 = vmax.f32 %v728, 1e-30
    %v786 = vmax.f32 %v730, 1e-30
    %v787 = vmax.f32 %v732, 1e-30
    %v788 = vmax.f32 %v734, 1e-30
    %v789 = vmax.f32 %v736, 1e-30
    %v790 = vmax.f32 %v738, 1e-30
    %v791 = vmax.f32 %v740, 1e-30
    %v792 = vmax.f32 %v742, 1e-30
    %v793 = vmax.f32 %v744, 1e-30
    %v794 = vmax.f32 %v746, 1e-30
    %v795 = vmax.f32 %v748, 1e-30
    %v796 = vmax.f32 %v750, 1e-30
    %v797 = vmax.f32 %v752, 1e-30
    %v798 = vmax.f32 %v754, 1e-30
    %v799 = vmax.f32 %v756, 1e-30
    %v800 = vmax.f32 %v758, 1e-30
    %v801 = vmax.f32 %v760, 1e-30
    %v802 = vmax.f32 %v762, 1e-30
    %v803 = vmax.f32 %v764, 1e-30
    %v804 = vmax.f32 %v766, 1e-30
    %v805 = vmax.f32 %v768, 1e-30
    %v806 = vmax.f32 %v770, 1e-30
    %v807 = vmax.f32 %v772, 1e-30
    %v808 = vmax.f32 %v774, 1e-30
    %v809 = vmax.f32 %v776, 1e-30
    %v810 = vrcp.pop %v778
    %v811 = vrcp.pop %v779
    %v812 = vrcp.pop %v780
    %v813 = vrcp.pop %v781
    %v814 = vrcp.pop %v782
    %v815 = vrcp.pop %v783
    %v816 = vrcp.pop %v784
    %v817 = vrcp.pop %v785
    %v818 = vrcp.pop %v786
    %v819 = vrcp.pop %v787
    %v820 = vrcp.pop %v788
    %v821 = vrcp.pop %v789
    %v822 = vrcp.pop %v790
    %v823 = vrcp.pop %v791
    %v824 = vrcp.pop %v792
    %v825 = vrcp.pop %v793
    %v826 = vrcp.pop %v794
    %v827 = vrcp.pop %v795
    %v828 = vrcp.pop %v796
    %v829 = vrcp.pop %v797
    %v830 = vrcp.pop %v798
    %v831 = vrcp.pop %v799
    %v832 = vrcp.pop %v800
    %v833 = vrcp.pop %v801
    %v834 = vrcp.pop %v802
    %v835 = vrcp.pop %v803
    %v836 = vrcp.pop %v804
    %v837 = vrcp.pop %v805
    %v838 = vrcp.pop %v806
    %v839 = vrcp.pop %v807
    %v840 = vrcp.pop %v808
    %v841 = vrcp.pop %v809
    %v842 = vmul.f32 %v715, %v810
    %v843 = vmul.f32 %v717, %v811
    %v844 = vmul.f32 %v719, %v812
    %v845 = vmul.f32 %v721, %v813
    %v846 = vmul.f32 %v723, %v814
    %v847 = vmul.f32 %v725, %v815
    %v848 = vmul.f32 %v727, %v816
    %v849 = vmul.f32 %v729, %v817
    %v850 = vmul.f32 %v731, %v818
    %v851 = vmul.f32 %v733, %v819
    %v852 = vmul.f32 %v735, %v820
    %v853 = vmul.f32 %v737, %v821
    %v854 = vmul.f32 %v739, %v822
    %v855 = vmul.f32 %v741, %v823
    %v856 = vmul.f32 %v743, %v824
    %v857 = vmul.f32 %v745, %v825
    %v858 = vmul.f32 %v747, %v826
    %v859 = vmul.f32 %v749, %v827
    %v860 = vmul.f32 %v751, %v828
    %v861 = vmul.f32 %v753, %v829
    %v862 = vmul.f32 %v755, %v830
    %v863 = vmul.f32 %v757, %v831
    %v864 = vmul.f32 %v759, %v832
    %v865 = vmul.f32 %v761, %v833
    %v866 = vmul.f32 %v763, %v834
    %v867 = vmul.f32 %v765, %v835
    %v868 = vmul.f32 %v767, %v836
    %v869 = vmul.f32 %v769, %v837
    %v870 = vmul.f32 %v771, %v838
    %v871 = vmul.f32 %v773, %v839
    %v872 = vmul.f32 %v775, %v840
    %v873 = vmul.f32 %v777, %v841
    %v874 = vpack.c.bf16 %v843, %v842
    %v875 = vpack.c.bf16 %v845, %v844
    %v876 = vpack.c.bf16 %v847, %v846
    %v877 = vpack.c.bf16 %v849, %v848
    %v878 = vpack.c.bf16 %v851, %v850
    %v879 = vpack.c.bf16 %v853, %v852
    %v880 = vpack.c.bf16 %v855, %v854
    %v881 = vpack.c.bf16 %v857, %v856
    %v882 = vpack.c.bf16 %v859, %v858
    %v883 = vpack.c.bf16 %v861, %v860
    %v884 = vpack.c.bf16 %v863, %v862
    %v885 = vpack.c.bf16 %v865, %v864
    %v886 = vpack.c.bf16 %v867, %v866
    %v887 = vpack.c.bf16 %v869, %v868
    %v888 = vpack.c.bf16 %v871, %v870
    %v889 = vpack.c.bf16 %v873, %v872
    %v890 = vld [vmem:[%s2] sm:$0xf]
    %v891 = vld [vmem:[%s2 + $0x4] sm:$0xf]
    %v892 = vld [vmem:[%s2 + $0x8] sm:$0xf]
    %v893 = vld [vmem:[%s2 + $0xc] sm:$0xf]
    %v894 = vld [vmem:[%s2 + $0x10] sm:$0xf]
    %v895 = vld [vmem:[%s2 + $0x14] sm:$0xf]
    %v896 = vld [vmem:[%s2 + $0x18] sm:$0xf]
    %v897 = vld [vmem:[%s2 + $0x1c] sm:$0xf]
    %v898 = vld [vmem:[%s2 + $0x20] sm:$0xf]
    %v899 = vld [vmem:[%s2 + $0x24] sm:$0xf]
    %v900 = vld [vmem:[%s2 + $0x28] sm:$0xf]
    %v901 = vld [vmem:[%s2 + $0x2c] sm:$0xf]
    %v902 = vld [vmem:[%s2 + $0x30] sm:$0xf]
    %v903 = vld [vmem:[%s2 + $0x34] sm:$0xf]
    %v904 = vld [vmem:[%s2 + $0x38] sm:$0xf]
    %v905 = vld [vmem:[%s2 + $0x3c] sm:$0xf]
    %v906 = vld [vmem:[%s3] sm:$0x1]
    %v908 = vlaneseq
    %v909 = vshrl.u32 %v908, 7
    %v910 = vsub.s32 0, %v909
    %v911 = vrot.slane %v906, %v910
    %v929 = vunpack.c.l.b16 %v890
    %v930 = vunpack.c.l.b16 %v891
    %v931 = vunpack.c.l.b16 %v892
    %v932 = vunpack.c.l.b16 %v893
    %v933 = vunpack.c.l.b16 %v894
    %v934 = vunpack.c.l.b16 %v895
    %v935 = vunpack.c.l.b16 %v896
    %v936 = vunpack.c.l.b16 %v897
    %v937 = vunpack.c.l.b16 %v898
    %v938 = vunpack.c.l.b16 %v899
    %v939 = vunpack.c.l.b16 %v900
    %v940 = vunpack.c.l.b16 %v901
    %v941 = vunpack.c.l.b16 %v902
    %v942 = vunpack.c.l.b16 %v903
    %v943 = vunpack.c.l.b16 %v904
    %v944 = vunpack.c.l.b16 %v905
    %v945 = vpack.c.b16 %v930, %v929
    %v946 = vpack.c.b16 %v932, %v931
    %v947 = vpack.c.b16 %v934, %v933
    %v948 = vpack.c.b16 %v936, %v935
    %v949 = vpack.c.b16 %v938, %v937
    %v950 = vpack.c.b16 %v940, %v939
    %v951 = vpack.c.b16 %v942, %v941
    %v952 = vpack.c.b16 %v944, %v943
    %961 = vmatprep.subr.bf16.mxu0 0
    %962 = vmatpush1.bf16.msra.mxu0 %v945
    %963 = vmatprep.subr.bf16.mxu0 0
    %964 = vmatpush1.bf16.msra.mxu0 %v946
    %965 = vmatprep.subr.bf16.mxu0 0
    %966 = vmatpush1.bf16.msra.mxu0 %v947
    %967 = vmatprep.subr.bf16.mxu0 0
    %968 = vmatpush1.bf16.msra.mxu0 %v948
    %969 = vmatprep.subr.bf16.mxu0 0
    %970 = vmatpush1.bf16.msra.mxu0 %v949
    %971 = vmatprep.subr.bf16.mxu0 0
    %972 = vmatpush1.bf16.msra.mxu0 %v950
    %973 = vmatprep.subr.bf16.mxu0 0
    %974 = vmatpush1.bf16.msra.mxu0 %v951
    %975 = vmatprep.subr.bf16.mxu0 0
    %976 = vmatpush1.bf16.msra.mxu0 %v952
    %977 = vmatprep.subr.bf16.mxu0 0
    %978 = vmatpush1.bf16.msra.mxu0 0
    %979 = vmatprep.subr.bf16.mxu0 0
    %980 = vmatpush1.bf16.msra.mxu0 0
    %981 = vmatprep.subr.bf16.mxu0 0
    %982 = vmatpush1.bf16.msra.mxu0 0
    %983 = vmatprep.subr.bf16.mxu0 0
    %984 = vmatpush1.bf16.msra.mxu0 0
    %985 = vmatprep.subr.bf16.mxu0 0
    %986 = vmatpush1.bf16.msra.mxu0 0
    %987 = vmatprep.subr.bf16.mxu0 0
    %988 = vmatpush1.bf16.msra.mxu0 0
    %989 = vmatprep.subr.bf16.mxu0 0
    %990 = vmatpush1.bf16.msra.mxu0 0
    %991 = vmatprep.subr.bf16.mxu0 0
    %992 = vmatpush1.bf16.msra.mxu0 0
    %993 = vmatprep.mubr.bf16.mxu0 0
    %994 = vmatmul.mubr.bf16.gmra.mrb[0].mxu0 %v874
    %v995 = vpop.f32.mrb[0].mxu0
    %v996 = vadd.f32 %v911, %v995
    %v997 = vpop.f32.mrb[0].mxu0
    %v998 = vpop.f32.mrb[0].mxu0
    %v999 = vadd.f32 %v911, %v998
    %v1000 = vpop.f32.mrb[0].mxu0
    %1001 = vmatprep.mubr.bf16.mxu0 0
    %1002 = vmatmul.mubr.bf16.gmra.mrb[0].mxu0 %v875
    %v1003 = vpop.f32.mrb[0].mxu0
    %v1004 = vadd.f32 %v911, %v1003
    %v1005 = vpop.f32.mrb[0].mxu0
    %v1006 = vpop.f32.mrb[0].mxu0
    %v1007 = vadd.f32 %v911, %v1006
    %v1008 = vpop.f32.mrb[0].mxu0
    %1009 = vmatprep.mubr.bf16.mxu0 0
    %1010 = vmatmul.mubr.bf16.gmra.mrb[0].mxu0 %v876
    %v1011 = vpop.f32.mrb[0].mxu0
    %v1012 = vadd.f32 %v911, %v1011
    %v1013 = vpop.f32.mrb[0].mxu0
    %v1014 = vpop.f32.mrb[0].mxu0
    %v1015 = vadd.f32 %v911, %v1014
    %v1016 = vpop.f32.mrb[0].mxu0
    %1017 = vmatprep.mubr.bf16.mxu0 0
    %1018 = vmatmul.mubr.bf16.gmra.mrb[0].mxu0 %v877
    %v1019 = vpop.f32.mrb[0].mxu0
    %v1020 = vadd.f32 %v911, %v1019
    %v1021 = vpop.f32.mrb[0].mxu0
    %v1022 = vpop.f32.mrb[0].mxu0
    %v1023 = vadd.f32 %v911, %v1022
    %v1024 = vpop.f32.mrb[0].mxu0
    %1025 = vmatprep.mubr.bf16.mxu0 0
    %1026 = vmatmul.mubr.bf16.gmra.mrb[0].mxu0 %v878
    %v1027 = vpop.f32.mrb[0].mxu0
    %v1028 = vadd.f32 %v911, %v1027
    %v1029 = vpop.f32.mrb[0].mxu0
    %v1030 = vpop.f32.mrb[0].mxu0
    %v1031 = vadd.f32 %v911, %v1030
    %v1032 = vpop.f32.mrb[0].mxu0
    %1033 = vmatprep.mubr.bf16.mxu0 0
    %1034 = vmatmul.mubr.bf16.gmra.mrb[0].mxu0 %v879
    %v1035 = vpop.f32.mrb[0].mxu0
    %v1036 = vadd.f32 %v911, %v1035
    %v1037 = vpop.f32.mrb[0].mxu0
    %v1038 = vpop.f32.mrb[0].mxu0
    %v1039 = vadd.f32 %v911, %v1038
    %v1040 = vpop.f32.mrb[0].mxu0
    %1041 = vmatprep.mubr.bf16.mxu0 0
    %1042 = vmatmul.mubr.bf16.gmra.mrb[0].mxu0 %v880
    %v1043 = vpop.f32.mrb[0].mxu0
    %v1044 = vadd.f32 %v911, %v1043
    %v1045 = vpop.f32.mrb[0].mxu0
    %v1046 = vpop.f32.mrb[0].mxu0
    %v1047 = vadd.f32 %v911, %v1046
    %v1048 = vpop.f32.mrb[0].mxu0
    %1049 = vmatprep.mubr.bf16.mxu0 0
    %1050 = vmatmul.mubr.bf16.gmra.mrb[0].mxu0 %v881
    %v1051 = vpop.f32.mrb[0].mxu0
    %v1052 = vadd.f32 %v911, %v1051
    %v1053 = vpop.f32.mrb[0].mxu0
    %v1054 = vpop.f32.mrb[0].mxu0
    %v1055 = vadd.f32 %v911, %v1054
    %v1056 = vpop.f32.mrb[0].mxu0
    %1057 = vmatprep.mubr.bf16.mxu0 0
    %1058 = vmatmul.mubr.bf16.gmra.mrb[0].mxu0 %v882
    %v1059 = vpop.f32.mrb[0].mxu0
    %v1060 = vadd.f32 %v911, %v1059
    %v1061 = vpop.f32.mrb[0].mxu0
    %v1062 = vpop.f32.mrb[0].mxu0
    %v1063 = vadd.f32 %v911, %v1062
    %v1064 = vpop.f32.mrb[0].mxu0
    %1065 = vmatprep.mubr.bf16.mxu0 0
    %1066 = vmatmul.mubr.bf16.gmra.mrb[0].mxu0 %v883
    %v1067 = vpop.f32.mrb[0].mxu0
    %v1068 = vadd.f32 %v911, %v1067
    %v1069 = vpop.f32.mrb[0].mxu0
    %v1070 = vpop.f32.mrb[0].mxu0
    %v1071 = vadd.f32 %v911, %v1070
    %v1072 = vpop.f32.mrb[0].mxu0
    %1073 = vmatprep.mubr.bf16.mxu0 0
    %1074 = vmatmul.mubr.bf16.gmra.mrb[0].mxu0 %v884
    %v1075 = vpop.f32.mrb[0].mxu0
    %v1076 = vadd.f32 %v911, %v1075
    %v1077 = vpop.f32.mrb[0].mxu0
    %v1078 = vpop.f32.mrb[0].mxu0
    %v1079 = vadd.f32 %v911, %v1078
    %v1080 = vpop.f32.mrb[0].mxu0
    %1081 = vmatprep.mubr.bf16.mxu0 0
    %1082 = vmatmul.mubr.bf16.gmra.mrb[0].mxu0 %v885
    %v1083 = vpop.f32.mrb[0].mxu0
    %v1084 = vadd.f32 %v911, %v1083
    %v1085 = vpop.f32.mrb[0].mxu0
    %v1086 = vpop.f32.mrb[0].mxu0
    %v1087 = vadd.f32 %v911, %v1086
    %v1088 = vpop.f32.mrb[0].mxu0
    %1089 = vmatprep.mubr.bf16.mxu0 0
    %1090 = vmatmul.mubr.bf16.gmra.mrb[0].mxu0 %v886
    %v1091 = vpop.f32.mrb[0].mxu0
    %v1092 = vadd.f32 %v911, %v1091
    %v1093 = vpop.f32.mrb[0].mxu0
    %v1094 = vpop.f32.mrb[0].mxu0
    %v1095 = vadd.f32 %v911, %v1094
    %v1096 = vpop.f32.mrb[0].mxu0
    %1097 = vmatprep.mubr.bf16.mxu0 0
    %1098 = vmatmul.mubr.bf16.gmra.mrb[0].mxu0 %v887
    %v1099 = vpop.f32.mrb[0].mxu0
    %v1100 = vadd.f32 %v911, %v1099
    %v1101 = vpop.f32.mrb[0].mxu0
    %v1102 = vpop.f32.mrb[0].mxu0
    %v1103 = vadd.f32 %v911, %v1102
    %v1104 = vpop.f32.mrb[0].mxu0
    %1105 = vmatprep.mubr.bf16.mxu0 0
    %1106 = vmatmul.mubr.bf16.gmra.mrb[0].mxu0 %v888
    %v1107 = vpop.f32.mrb[0].mxu0
    %v1108 = vadd.f32 %v911, %v1107
    %v1109 = vpop.f32.mrb[0].mxu0
    %v1110 = vpop.f32.mrb[0].mxu0
    %v1111 = vadd.f32 %v911, %v1110
    %v1112 = vpop.f32.mrb[0].mxu0
    %1113 = vmatprep.mubr.bf16.mxu0 0
    %1114 = vmatmul.mubr.bf16.gmra.mrb[0].mxu0 %v889
    %v1115 = vpop.f32.mrb[0].mxu0
    %v1116 = vadd.f32 %v911, %v1115
    %v1117 = vpop.f32.mrb[0].mxu0
    %v1118 = vpop.f32.mrb[0].mxu0
    %v1119 = vadd.f32 %v911, %v1118
    %v1120 = vpop.f32.mrb[0].mxu0
    %1121 = vdwg.mxu0
    %1122 = vst [vmem:[%s4] sm:$0xff] %v996
    %1123 = vst [vmem:[%s4 + $0x8] sm:$0xff] %v999
    %1124 = vst [vmem:[%s4 + $0x10] sm:$0xff] %v1004
    %1125 = vst [vmem:[%s4 + $0x18] sm:$0xff] %v1007
    %1126 = vst [vmem:[%s4 + $0x20] sm:$0xff] %v1012
    %1127 = vst [vmem:[%s4 + $0x28] sm:$0xff] %v1015
    %1128 = vst [vmem:[%s4 + $0x30] sm:$0xff] %v1020
    %1129 = vst [vmem:[%s4 + $0x38] sm:$0xff] %v1023
    %1130 = vst [vmem:[%s4 + $0x40] sm:$0xff] %v1028
    %1131 = vst [vmem:[%s4 + $0x48] sm:$0xff] %v1031
    %1132 = vst [vmem:[%s4 + $0x50] sm:$0xff] %v1036
    %1133 = vst [vmem:[%s4 + $0x58] sm:$0xff] %v1039
    %1134 = vst [vmem:[%s4 + $0x60] sm:$0xff] %v1044
    %1135 = vst [vmem:[%s4 + $0x68] sm:$0xff] %v1047
    %1136 = vst [vmem:[%s4 + $0x70] sm:$0xff] %v1052
    %1137 = vst [vmem:[%s4 + $0x78] sm:$0xff] %v1055
    %1138 = vst [vmem:[%s4 + $0x80] sm:$0xff] %v1060
    %1139 = vst [vmem:[%s4 + $0x88] sm:$0xff] %v1063
    %1140 = vst [vmem:[%s4 + $0x90] sm:$0xff] %v1068
    %1141 = vst [vmem:[%s4 + $0x98] sm:$0xff] %v1071
    %1142 = vst [vmem:[%s4 + $0xa0] sm:$0xff] %v1076
    %1143 = vst [vmem:[%s4 + $0xa8] sm:$0xff] %v1079
    %1144 = vst [vmem:[%s4 + $0xb0] sm:$0xff] %v1084
    %1145 = vst [vmem:[%s4 + $0xb8] sm:$0xff] %v1087
    %1146 = vst [vmem:[%s4 + $0xc0] sm:$0xff] %v1092
    %1147 = vst [vmem:[%s4 + $0xc8] sm:$0xff] %v1095
    %1148 = vst [vmem:[%s4 + $0xd0] sm:$0xff] %v1100
    %1149 = vst [vmem:[%s4 + $0xd8] sm:$0xff] %v1103
    %1150 = vst [vmem:[%s4 + $0xe0] sm:$0xff] %v1108
    %1151 = vst [vmem:[%s4 + $0xe8] sm:$0xff] %v1111
    %1152 = vst [vmem:[%s4 + $0xf0] sm:$0xff] %v1116
    %1153 = vst [vmem:[%s4 + $0xf8] sm:$0xff] %v1119
  $region25: #{genconv_forward.1} parent=0 // pred_fallthru
    _
  // Predicated region
  $region26: #{genconv_forward.1} parent=0 // pred_check
    _
  $region27: #{genconv_forward.1} parent=0 // pred_check_branch
    %1155 = sbr.rel (0) target = $region29
  $region28: #{genconv_forward.1} parent=0 // pred_region
    _
  $region29: #{genconv_forward.1} parent=0 // pred_fallthru
    _
  // Predicated region
  $region30: #{genconv_forward.1} parent=0 // pred_check
    _
  $region31: #{genconv_forward.1} parent=0 // pred_check_branch
    %1157 = sbr.rel (0) target = $region33
  $region32: #{genconv_forward.1} parent=0 // pred_region
    _
  $region33: #{genconv_forward.1} parent=0 // pred_fallthru
    _

</llo_original>
